<compile_context>
chip_gen: v5e
topology: v5e:2x2
jax: 0.10.0
libtpu: 0.0.40
codegen_flags: <defaults>
</compile_context>

<pallas_src>
import functools

import jax
import jax.numpy as jnp
from jax.experimental import pallas as pl
from jax.experimental.pallas import tpu as pltpu


def _round_up(x: int, m: int) -> int:
    return (x + m - 1) // m * m


def _critic_kernel(s_ref, a_ref, w1s_ref, w1a_ref, b1_ref,
                   w2_ref, b2_ref, w3_ref, b3_ref, o_ref):
    """Fused 3-layer MLP for one batch tile (concat fused, bf16 MXU, f32 VPU)."""
    s = s_ref[...].astype(jnp.bfloat16)
    a = a_ref[...].astype(jnp.bfloat16)

    # Layer 1: state@W1_s + action@W1_a + b1, ReLU  (f32 accumulation on MXU).
    h = (jnp.dot(s, w1s_ref[...], preferred_element_type=jnp.float32)
         + jnp.dot(a, w1a_ref[...], preferred_element_type=jnp.float32)
         + b1_ref[...])
    h = jnp.maximum(h, 0.0)

    # Layer 2: h@W2 + b2, ReLU.
    h = jnp.dot(h.astype(jnp.bfloat16), w2_ref[...],
                preferred_element_type=jnp.float32) + b2_ref[...]
    h = jnp.maximum(h, 0.0)

    # Head (H -> 1): elementwise multiply + lane reduction (VPU/XLU) instead of a
    # single-output-column MXU matmul; b3 read from SMEM as a scalar.
    q = jnp.sum(h * w3_ref[...], axis=-1, keepdims=True) + b3_ref[0, 0]
    o_ref[...] = q.astype(o_ref.dtype)


@functools.partial(jax.jit, static_argnames=("tile_b_max",))
def critic_forward(state, action, params, tile_b_max=512):
    """state: [B, state_dim], action: [B, action_dim] -> q: [B, 1] (float32)."""
    w1, b1, w2, b2, w3, b3 = params
    B, S = state.shape
    A = action.shape[1]
    H = w1.shape[1]

    # Split W1 once so the state/action concat never materializes; keep matmul
    # weights in bf16 (the head row W3 stays f32 since it feeds the VPU reduction).
    w1s = w1[:S].astype(jnp.bfloat16)
    w1a = w1[S:].astype(jnp.bfloat16)
    w2b = w2.astype(jnp.bfloat16)
    w3r = jnp.reshape(w3, (1, H))          # [H,1] -> [1,H], f32

    # Batch tiling: pad B up to a multiple of the tile so every grid step is full.
    tile_b = min(tile_b_max, _round_up(B, 8))
    b_pad = _round_up(B, tile_b)
    if b_pad != B:
        state = jnp.pad(state, ((0, b_pad - B), (0, 0)))
        action = jnp.pad(action, ((0, b_pad - B), (0, 0)))

    grid = (b_pad // tile_b,)

    def resident(block_shape):
        # Same block every grid step -> DMA'd once, stays VMEM-resident.
        return pl.BlockSpec(block_shape, lambda i: (0, 0))

    q = pl.pallas_call(
        _critic_kernel,
        out_shape=jax.ShapeDtypeStruct((b_pad, 1), jnp.float32),
        grid=grid,
        in_specs=[
            pl.BlockSpec((tile_b, S), lambda i: (i, 0)),          # state tile
            pl.BlockSpec((tile_b, A), lambda i: (i, 0)),          # action tile
            resident((S, H)),                                     # W1_state (bf16)
            resident((A, H)),                                     # W1_action (bf16)
            resident((1, H)),                                     # b1 (f32)
            resident((H, H)),                                     # W2 (bf16)
            resident((1, H)),                                     # b2 (f32)
            resident((1, H)),                                     # W3 row (f32)
            pl.BlockSpec(memory_space=pltpu.MemorySpace.SMEM),    # b3 scalar
        ],
        out_specs=pl.BlockSpec((tile_b, 1), lambda i: (i, 0)),
        compiler_params=pltpu.CompilerParams(
            dimension_semantics=("parallel",),
        ),
    )(state, action, w1s, w1a, b1, w2b, b2, w3r, b3)

    return q[:B]


def init_critic_params(key, state_dim, action_dim, hidden_units=256):
    """Matches Critic.init_weights: weights ~ U(-1/10000, 1/10000), biases = 0.
       Weights stored [in_features, out_features]; biases as [1, out_features]."""
    input_scale = 10000.0
    k1, k2, k3 = jax.random.split(key, 3)
    lim = 1.0 / input_scale

    w1 = jax.random.uniform(k1, (state_dim + action_dim, hidden_units),
                            jnp.float32, -lim, lim)
    b1 = jnp.zeros((1, hidden_units), jnp.float32)
    w2 = jax.random.uniform(k2, (hidden_units, hidden_units),
                            jnp.float32, -lim, lim)
    b2 = jnp.zeros((1, hidden_units), jnp.float32)
    w3 = jax.random.uniform(k3, (hidden_units, 1), jnp.float32, -lim, lim)
    b3 = jnp.zeros((1, 1), jnp.float32)
    return (w1, b1, w2, b2, w3, b3)


def _reference_forward(state, action, params):
    """Pure-JAX reference following the kernel's exact dtype path
       (bf16 matmul operands, f32 accumulation, f32 elementwise)."""
    w1, b1, w2, b2, w3, b3 = params
    S = state.shape[1]
    w1s = w1[:S].astype(jnp.bfloat16)
    w1a = w1[S:].astype(jnp.bfloat16)
    h = (jnp.dot(state.astype(jnp.bfloat16), w1s, preferred_element_type=jnp.float32)
         + jnp.dot(action.astype(jnp.bfloat16), w1a, preferred_element_type=jnp.float32)
         + b1)
    h = jnp.maximum(h, 0.0)
    h = jnp.dot(h.astype(jnp.bfloat16), w2.astype(jnp.bfloat16),
                preferred_element_type=jnp.float32) + b2
    h = jnp.maximum(h, 0.0)
    return jnp.sum(h * jnp.reshape(w3, (1, -1)), axis=-1, keepdims=True) + b3[0, 0]


def _reference_forward_f32(state, action, params):
    """Pure-f32 reference matching the PyTorch module exactly."""
    x = jnp.concatenate([state, action], axis=-1)
    w1, b1, w2, b2, w3, b3 = params
    h = jnp.maximum(x @ w1 + b1, 0.0)
    h = jnp.maximum(h @ w2 + b2, 0.0)
    return h @ w3 + b3


if __name__ == "__main__":
    # Small, deterministic shapes consistent with the module's forward.
    batch = 20            # deliberately NOT a multiple of the batch tile (tests padding)
    state_dim = 12
    action_dim = 4
    hidden_units = 256    # module default; hidden_layers=2

    key = jax.random.PRNGKey(0)
    k_s, k_a, k_p = jax.random.split(key, 3)

    state = jax.random.normal(k_s, (batch, state_dim), jnp.float32)
    action = jax.random.normal(k_a, (batch, action_dim), jnp.float32)
    params = init_critic_params(k_p, state_dim, action_dim, hidden_units)

    # tile_b_max=8 forces a multi-step batch grid even at this toy batch size so the
    # tiled/pipelined path (resident weights + padded last tile) is actually exercised.
    q = critic_forward(state, action, params, tile_b_max=8)
    jax.block_until_ready(q)
    assert q.shape == (batch, 1), q.shape

    # Tight check against a reference that uses the same dtype path as the kernel.
    q_ref = _reference_forward(state, action, params)
    assert jnp.allclose(q, q_ref, atol=1e-12, rtol=1e-3), "mismatch vs bf16-path reference"

    # Loose sanity check against pure-f32 math (bf16 matmul operands trade a little
    # precision for MXU throughput; values are tiny due to the 1e-4 init scale).
    q_f32 = _reference_forward_f32(state, action, params)
    rel_err = float(jnp.max(jnp.abs(q - q_f32)) / (jnp.max(jnp.abs(q_f32)) + 1e-30))
    assert rel_err < 0.1, f"too far from f32 reference (rel_err={rel_err})"

    print("KERNEL_OK")
</pallas_src>

<mosaic_0001>
module attributes {stable_mosaic.version = 11 : i64} {
  func.func @_critic_kernel(%arg0: i32, %arg1: memref<8x12xf32, #tpu.memory_space<vmem>>, %arg2: memref<8x4xf32, #tpu.memory_space<vmem>>, %arg3: memref<12x256xbf16, #tpu.memory_space<vmem>>, %arg4: memref<4x256xbf16, #tpu.memory_space<vmem>>, %arg5: memref<1x256xf32, #tpu.memory_space<vmem>>, %arg6: memref<256x256xbf16, #tpu.memory_space<vmem>>, %arg7: memref<1x256xf32, #tpu.memory_space<vmem>>, %arg8: memref<1x256xf32, #tpu.memory_space<vmem>>, %arg9: memref<1x1xf32, #tpu.memory_space<smem>>, %arg10: memref<8x1xf32, #tpu.memory_space<vmem>>) attributes {dimension_semantics = [#tpu.dimension_semantics<parallel>], iteration_bounds = array<i64: 3>, scalar_prefetch = 0 : i64, scratch_operands = 0 : i64, tpu.core_type = #tpu.core_type<tc>, window_params = [{transform_indices = @transform_0, window_bounds = array<i64: 8, 12>}, {transform_indices = @transform_1, window_bounds = array<i64: 8, 4>}, {pipeline_mode = #tpu.pipeline_mode<synchronous>, transform_indices = @transform_2, window_bounds = array<i64: 12, 256>}, {pipeline_mode = #tpu.pipeline_mode<synchronous>, transform_indices = @transform_3, window_bounds = array<i64: 4, 256>}, {pipeline_mode = #tpu.pipeline_mode<synchronous>, transform_indices = @transform_4, window_bounds = array<i64: 1, 256>}, {pipeline_mode = #tpu.pipeline_mode<synchronous>, transform_indices = @transform_5, window_bounds = array<i64: 256, 256>}, {pipeline_mode = #tpu.pipeline_mode<synchronous>, transform_indices = @transform_6, window_bounds = array<i64: 1, 256>}, {pipeline_mode = #tpu.pipeline_mode<synchronous>, transform_indices = @transform_7, window_bounds = array<i64: 1, 256>}, {transform_indices = @transform_8, window_bounds = array<i64: 1, 1>}, {transform_indices = @transform_9, window_bounds = array<i64: 8, 1>}]} {
    %c0 = arith.constant 0 : index
    %c0_0 = arith.constant 0 : index
    %0 = vector.load %arg1[%c0, %c0_0] : memref<8x12xf32, #tpu.memory_space<vmem>>, vector<8x12xf32>
    %1 = arith.truncf %0 : vector<8x12xf32> to vector<8x12xbf16>
    %c0_1 = arith.constant 0 : index
    %c0_2 = arith.constant 0 : index
    %2 = vector.load %arg2[%c0_1, %c0_2] : memref<8x4xf32, #tpu.memory_space<vmem>>, vector<8x4xf32>
    %3 = arith.truncf %2 : vector<8x4xf32> to vector<8x4xbf16>
    %c0_3 = arith.constant 0 : index
    %c0_4 = arith.constant 0 : index
    %4 = vector.load %arg3[%c0_3, %c0_4] : memref<12x256xbf16, #tpu.memory_space<vmem>>, vector<12x256xbf16>
    %cst = arith.constant dense<0.000000e+00> : vector<8x256xf32>
    %5 = tpu.matmul %1, %4, %cst {dimension_numbers = #tpu.dot_dimension_numbers<[1], [0], [0], [1], [0, 0, 1, 1], [], []>} : vector<8x12xbf16>, vector<12x256xbf16>, vector<8x256xf32> -> vector<8x256xf32>
    %c0_5 = arith.constant 0 : index
    %c0_6 = arith.constant 0 : index
    %6 = vector.load %arg4[%c0_5, %c0_6] : memref<4x256xbf16, #tpu.memory_space<vmem>>, vector<4x256xbf16>
    %cst_7 = arith.constant dense<0.000000e+00> : vector<8x256xf32>
    %7 = tpu.matmul %3, %6, %cst_7 {dimension_numbers = #tpu.dot_dimension_numbers<[1], [0], [0], [1], [0, 0, 1, 1], [], []>} : vector<8x4xbf16>, vector<4x256xbf16>, vector<8x256xf32> -> vector<8x256xf32>
    %8 = arith.addf %5, %7 : vector<8x256xf32>
    %c0_8 = arith.constant 0 : index
    %c0_9 = arith.constant 0 : index
    %9 = vector.load %arg5[%c0_8, %c0_9] : memref<1x256xf32, #tpu.memory_space<vmem>>, vector<1x256xf32>
    %10 = vector.broadcast %9 : vector<1x256xf32> to vector<8x256xf32>
    %11 = arith.addf %8, %10 : vector<8x256xf32>
    %cst_10 = arith.constant 0.000000e+00 : f32
    %12 = vector.broadcast %cst_10 : f32 to vector<8x256xf32>
    %13 = arith.maximumf %11, %12 : vector<8x256xf32>
    %14 = arith.truncf %13 : vector<8x256xf32> to vector<8x256xbf16>
    %c0_11 = arith.constant 0 : index
    %c0_12 = arith.constant 0 : index
    %15 = vector.load %arg6[%c0_11, %c0_12] : memref<256x256xbf16, #tpu.memory_space<vmem>>, vector<256x256xbf16>
    %cst_13 = arith.constant dense<0.000000e+00> : vector<8x256xf32>
    %16 = tpu.matmul %14, %15, %cst_13 {dimension_numbers = #tpu.dot_dimension_numbers<[1], [0], [0], [1], [0, 0, 1, 1], [], []>} : vector<8x256xbf16>, vector<256x256xbf16>, vector<8x256xf32> -> vector<8x256xf32>
    %c0_14 = arith.constant 0 : index
    %c0_15 = arith.constant 0 : index
    %17 = vector.load %arg7[%c0_14, %c0_15] : memref<1x256xf32, #tpu.memory_space<vmem>>, vector<1x256xf32>
    %18 = vector.broadcast %17 : vector<1x256xf32> to vector<8x256xf32>
    %19 = arith.addf %16, %18 : vector<8x256xf32>
    %cst_16 = arith.constant 0.000000e+00 : f32
    %20 = vector.broadcast %cst_16 : f32 to vector<8x256xf32>
    %21 = arith.maximumf %19, %20 : vector<8x256xf32>
    %c0_17 = arith.constant 0 : index
    %c0_18 = arith.constant 0 : index
    %22 = vector.load %arg8[%c0_17, %c0_18] : memref<1x256xf32, #tpu.memory_space<vmem>>, vector<1x256xf32>
    %23 = vector.broadcast %22 : vector<1x256xf32> to vector<8x256xf32>
    %24 = arith.mulf %21, %23 : vector<8x256xf32>
    %cst_19 = arith.constant dense<0.000000e+00> : vector<8xf32>
    %25 = vector.multi_reduction <add>, %24, %cst_19 [1] : vector<8x256xf32> to vector<8xf32>
    %26 = vector.shape_cast %25 : vector<8xf32> to vector<8x1xf32>
    %c0_20 = arith.constant 0 : index
    %c0_21 = arith.constant 0 : index
    %27 = memref.load %arg9[%c0_20, %c0_21] : memref<1x1xf32, #tpu.memory_space<smem>>
    %28 = vector.broadcast %27 : f32 to vector<8x1xf32>
    %29 = arith.addf %26, %28 : vector<8x1xf32>
    %c0_22 = arith.constant 0 : index
    %c0_23 = arith.constant 0 : index
    %30 = vector.load %arg10[%c0_22, %c0_23] : memref<8x1xf32, #tpu.memory_space<vmem>>, vector<8x1xf32>
    tpu.vector_store %arg10[%c0_22, %c0_23], %29 {strides = array<i32>} : memref<8x1xf32, #tpu.memory_space<vmem>>, vector<8x1xf32>,
    return
  }
  func.func @transform_0(%arg0: i32) -> (i32, i32) {
    %c0_i32 = arith.constant 0 : i32
    %c0_i32_0 = arith.constant 0 : i32
    return %arg0, %c0_i32 : i32, i32
  }
  func.func @transform_1(%arg0: i32) -> (i32, i32) {
    %c0_i32 = arith.constant 0 : i32
    %c0_i32_0 = arith.constant 0 : i32
    return %arg0, %c0_i32 : i32, i32
  }
  func.func @transform_2(%arg0: i32) -> (i32, i32) {
    %c0_i32 = arith.constant 0 : i32
    %c0_i32_0 = arith.constant 0 : i32
    %c0_i32_1 = arith.constant 0 : i32
    return %c0_i32, %c0_i32_0 : i32, i32
  }
  func.func @transform_3(%arg0: i32) -> (i32, i32) {
    %c0_i32 = arith.constant 0 : i32
    %c0_i32_0 = arith.constant 0 : i32
    %c0_i32_1 = arith.constant 0 : i32
    return %c0_i32, %c0_i32_0 : i32, i32
  }
  func.func @transform_4(%arg0: i32) -> (i32, i32) {
    %c0_i32 = arith.constant 0 : i32
    %c0_i32_0 = arith.constant 0 : i32
    %c0_i32_1 = arith.constant 0 : i32
    return %c0_i32, %c0_i32_0 : i32, i32
  }
  func.func @transform_5(%arg0: i32) -> (i32, i32) {
    %c0_i32 = arith.constant 0 : i32
    %c0_i32_0 = arith.constant 0 : i32
    %c0_i32_1 = arith.constant 0 : i32
    return %c0_i32, %c0_i32_0 : i32, i32
  }
  func.func @transform_6(%arg0: i32) -> (i32, i32) {
    %c0_i32 = arith.constant 0 : i32
    %c0_i32_0 = arith.constant 0 : i32
    %c0_i32_1 = arith.constant 0 : i32
    return %c0_i32, %c0_i32_0 : i32, i32
  }
  func.func @transform_7(%arg0: i32) -> (i32, i32) {
    %c0_i32 = arith.constant 0 : i32
    %c0_i32_0 = arith.constant 0 : i32
    %c0_i32_1 = arith.constant 0 : i32
    return %c0_i32, %c0_i32_0 : i32, i32
  }
  func.func @transform_8(%arg0: i32) -> (i32, i32) {
    %c0_i32 = arith.constant 0 : i32
    %c0_i32_0 = arith.constant 0 : i32
    %c0_i32_1 = arith.constant 0 : i32
    return %c0_i32, %c0_i32_0 : i32, i32
  }
  func.func @transform_9(%arg0: i32) -> (i32, i32) {
    %c0_i32 = arith.constant 0 : i32
    %c0_i32_0 = arith.constant 0 : i32
    return %arg0, %c0_i32 : i32, i32
  }
}

</mosaic_0001>

<llo_original>
// kernel: critic_forward.1
$region0: #{critic_forward.1}
  #allocation0 [shape = 'u32[]', space=smem, size = 0x4, offset = 0x4, fixed_abs, tag = 'smem constant byte address 0x4 - core index']
  #allocation1 [shape = 'u32[72,128]{1,0:T(1,128)}', space=vmem, size = 0x9000, scoped, tag = 'internal scratch']
  #allocation2 [shape = 'f32[1,1]{1,0:T(1,128)S(6)}', space=smem, size = 0x200, scoped, tag = 'scoped memory for critic_forward.1']
  %s0 = inlined_call_operand.vmem [shape: f32[24,12], index: 0, kind: input, shape index: {}]
  %s1 = inlined_call_operand.vmem [shape: f32[24,4], index: 1, kind: input, shape index: {}]
  %s2 = inlined_call_operand.vmem [shape: bf16[12,256], index: 2, kind: input, shape index: {}]
  %s3 = inlined_call_operand.vmem [shape: bf16[4,256], index: 3, kind: input, shape index: {}]
  %s4 = inlined_call_operand.vmem [shape: f32[1,256], index: 4, kind: input, shape index: {}]
  %s5 = inlined_call_operand.vmem [shape: bf16[256,256], index: 5, kind: input, shape index: {}]
  %s6 = inlined_call_operand.vmem [shape: f32[1,256], index: 6, kind: input, shape index: {}]
  %s7 = inlined_call_operand.vmem [shape: f32[1,256], index: 7, kind: input, shape index: {}]
  %s8 = inlined_call_operand.<no memory space> [shape: f32[1,1], index: 8, kind: input, shape index: {}]
  %s9 = inlined_call_operand.vmem [shape: f32[24,1], index: 9, kind: output, shape index: {}]
  %s10 = sld [smem:[#allocation0]]
  $region69: #{critic_forward.1} parent=0
    _
  %s12 = ssub.s32 1, %s10
  %s13 = scalar_select 0, %s12, %s10
  %14 = sst [smem:[#allocation2]] %s8
  loop: start=0, step=1, limit=5
  $region2: #{critic_forward.1} parent=0 // loop_pre_header
    _
  $region3: #{critic_forward.1} parent=0 // loop_header
    %s16 = sphi 0, %s20
    %p17 = scmp.ge.s32.totalorder %s16, 5
    %s26 = sphi 0, %s28
    %s29 = sphi 0, %s26
    %s30 = sphi 0, %s29
    %s46 = sphi 0, %s30
    %s52 = sphi 0, %s54
    %s55 = sphi 0, %s52
    %s56 = sphi 0, %s55
    %s72 = sphi 0, %s56
    %s76 = sphi 0, %s76
    %s78 = sphi 0, %s76
    %s79 = sphi 0, %s78
    %s93 = sphi 0, %s79
    %s97 = sphi 0, %s97
    %s99 = sphi 0, %s97
    %s100 = sphi 0, %s99
    %s114 = sphi 0, %s100
    %s118 = sphi 0, %s118
    %s120 = sphi 0, %s118
    %s121 = sphi 0, %s120
    %s135 = sphi 0, %s121
    %s139 = sphi 0, %s139
    %s141 = sphi 0, %s139
    %s142 = sphi 0, %s141
    %s156 = sphi 0, %s142
    %s160 = sphi 0, %s160
    %s162 = sphi 0, %s160
    %s163 = sphi 0, %s162
    %s177 = sphi 0, %s163
    %s181 = sphi 0, %s181
    %s183 = sphi 0, %s181
    %s184 = sphi 0, %s183
    %s198 = sphi 0, %s184
    %s202 = sphi 0, %s202
    %s204 = sphi 0, %s202
    %s205 = sphi 0, %s204
    %s219 = sphi 0, %s205
    %s225 = sphi 0, %s227
    %s228 = sphi 0, %s225
    %s229 = sphi 0, %s228
    %s245 = sphi 0, %s229
  $region4: #{critic_forward.1} parent=0 // loop_header_branch
    %19 = sbr.rel (%p17) target = $region8
  $region5: #{critic_forward.1} parent=0 // loop_body
    %s21 = ssub.s32 %s16, 1
    %s22 = ssub.s32 %s16, 2
    %s23 = sadd.s32 %s16, 1
    %s24 = ssub.s32 %s16, %s23
    %p25 = scmp.eq.s32.totalorder %s24, 0
    %s27 = sadd.s32 %s26, 1
    %s28 = scalar_select %p25, %s26, %s27
    %p31 = pneg %p25
    %p32 = scmp.eq.s32.totalorder %s16, 2
    %p33 = por %p31, %p32
    %p34 = scmp.ne.s32.totalorder %s26, %s29
    %p35 = scmp.eq.s32.totalorder %s16, 0
    %p36 = por %p34, %p35
    %p37 = scmp.ne.s32.totalorder %s26, %s29
    %p38 = scmp.eq.s32.totalorder %s21, 2
    %p39 = por %p37, %p38
    %p40 = scmp.ne.s32.totalorder %s29, %s30
    %p41 = scmp.eq.s32.totalorder %s21, 0
    %p42 = por %p40, %p41
    %p43 = scmp.ne.s32.totalorder %s29, %s30
    %p44 = scmp.eq.s32.totalorder %s22, 2
    %p45 = por %p43, %p44
    %p47 = scmp.ne.s32.totalorder %s30, %s46
    %p48 = scmp.eq.s32.totalorder %s22, 0
    %p49 = por %p47, %p48
    %s50 = ssub.s32 %s16, %s23
    %p51 = scmp.eq.s32.totalorder %s50, 0
    %s53 = sadd.s32 %s52, 1
    %s54 = scalar_select %p51, %s52, %s53
    %p57 = pneg %p51
    %p58 = scmp.eq.s32.totalorder %s16, 2
    %p59 = por %p57, %p58
    %p60 = scmp.ne.s32.totalorder %s52, %s55
    %p61 = scmp.eq.s32.totalorder %s16, 0
    %p62 = por %p60, %p61
    %p63 = scmp.ne.s32.totalorder %s52, %s55
    %p64 = scmp.eq.s32.totalorder %s21, 2
    %p65 = por %p63, %p64
    %p66 = scmp.ne.s32.totalorder %s55, %s56
    %p67 = scmp.eq.s32.totalorder %s21, 0
    %p68 = por %p66, %p67
    %p69 = scmp.ne.s32.totalorder %s55, %s56
    %p70 = scmp.eq.s32.totalorder %s22, 2
    %p71 = por %p69, %p70
    %p73 = scmp.ne.s32.totalorder %s56, %s72
    %p74 = scmp.eq.s32.totalorder %s22, 0
    %p75 = por %p73, %p74
    %s77 = sadd.s32 %s76, 1
    %p80 = scmp.eq.s32.totalorder %s16, 2
    %p81 = scmp.ne.s32.totalorder %s76, %s78
    %p82 = scmp.eq.s32.totalorder %s16, 0
    %p83 = por %p81, %p82
    %p84 = scmp.ne.s32.totalorder %s76, %s78
    %p85 = scmp.eq.s32.totalorder %s21, 2
    %p86 = por %p84, %p85
    %p87 = scmp.ne.s32.totalorder %s78, %s79
    %p88 = scmp.eq.s32.totalorder %s21, 0
    %p89 = por %p87, %p88
    %p90 = scmp.ne.s32.totalorder %s78, %s79
    %p91 = scmp.eq.s32.totalorder %s22, 2
    %p92 = por %p90, %p91
    %p94 = scmp.ne.s32.totalorder %s79, %s93
    %p95 = scmp.eq.s32.totalorder %s22, 0
    %p96 = por %p94, %p95
    %s98 = sadd.s32 %s97, 1
    %p101 = scmp.eq.s32.totalorder %s16, 2
    %p102 = scmp.ne.s32.totalorder %s97, %s99
    %p103 = scmp.eq.s32.totalorder %s16, 0
    %p104 = por %p102, %p103
    %p105 = scmp.ne.s32.totalorder %s97, %s99
    %p106 = scmp.eq.s32.totalorder %s21, 2
    %p107 = por %p105, %p106
    %p108 = scmp.ne.s32.totalorder %s99, %s100
    %p109 = scmp.eq.s32.totalorder %s21, 0
    %p110 = por %p108, %p109
    %p111 = scmp.ne.s32.totalorder %s99, %s100
    %p112 = scmp.eq.s32.totalorder %s22, 2
    %p113 = por %p111, %p112
    %p115 = scmp.ne.s32.totalorder %s100, %s114
    %p116 = scmp.eq.s32.totalorder %s22, 0
    %p117 = por %p115, %p116
    %s119 = sadd.s32 %s118, 1
    %p122 = scmp.eq.s32.totalorder %s16, 2
    %p123 = scmp.ne.s32.totalorder %s118, %s120
    %p124 = scmp.eq.s32.totalorder %s16, 0
    %p125 = por %p123, %p124
    %p126 = scmp.ne.s32.totalorder %s118, %s120
    %p127 = scmp.eq.s32.totalorder %s21, 2
    %p128 = por %p126, %p127
    %p129 = scmp.ne.s32.totalorder %s120, %s121
    %p130 = scmp.eq.s32.totalorder %s21, 0
    %p131 = por %p129, %p130
    %p132 = scmp.ne.s32.totalorder %s120, %s121
    %p133 = scmp.eq.s32.totalorder %s22, 2
    %p134 = por %p132, %p133
    %p136 = scmp.ne.s32.totalorder %s121, %s135
    %p137 = scmp.eq.s32.totalorder %s22, 0
    %p138 = por %p136, %p137
    %s140 = sadd.s32 %s139, 1
    %p143 = scmp.eq.s32.totalorder %s16, 2
    %p144 = scmp.ne.s32.totalorder %s139, %s141
    %p145 = scmp.eq.s32.totalorder %s16, 0
    %p146 = por %p144, %p145
    %p147 = scmp.ne.s32.totalorder %s139, %s141
    %p148 = scmp.eq.s32.totalorder %s21, 2
    %p149 = por %p147, %p148
    %p150 = scmp.ne.s32.totalorder %s141, %s142
    %p151 = scmp.eq.s32.totalorder %s21, 0
    %p152 = por %p150, %p151
    %p153 = scmp.ne.s32.totalorder %s141, %s142
    %p154 = scmp.eq.s32.totalorder %s22, 2
    %p155 = por %p153, %p154
    %p157 = scmp.ne.s32.totalorder %s142, %s156
    %p158 = scmp.eq.s32.totalorder %s22, 0
    %p159 = por %p157, %p158
    %s161 = sadd.s32 %s160, 1
    %p164 = scmp.eq.s32.totalorder %s16, 2
    %p165 = scmp.ne.s32.totalorder %s160, %s162
    %p166 = scmp.eq.s32.totalorder %s16, 0
    %p167 = por %p165, %p166
    %p168 = scmp.ne.s32.totalorder %s160, %s162
    %p169 = scmp.eq.s32.totalorder %s21, 2
    %p170 = por %p168, %p169
    %p171 = scmp.ne.s32.totalorder %s162, %s163
    %p172 = scmp.eq.s32.totalorder %s21, 0
    %p173 = por %p171, %p172
    %p174 = scmp.ne.s32.totalorder %s162, %s163
    %p175 = scmp.eq.s32.totalorder %s22, 2
    %p176 = por %p174, %p175
    %p178 = scmp.ne.s32.totalorder %s163, %s177
    %p179 = scmp.eq.s32.totalorder %s22, 0
    %p180 = por %p178, %p179
    %s182 = sadd.s32 %s181, 1
    %p185 = scmp.eq.s32.totalorder %s16, 2
    %p186 = scmp.ne.s32.totalorder %s181, %s183
    %p187 = scmp.eq.s32.totalorder %s16, 0
    %p188 = por %p186, %p187
    %p189 = scmp.ne.s32.totalorder %s181, %s183
    %p190 = scmp.eq.s32.totalorder %s21, 2
    %p191 = por %p189, %p190
    %p192 = scmp.ne.s32.totalorder %s183, %s184
    %p193 = scmp.eq.s32.totalorder %s21, 0
    %p194 = por %p192, %p193
    %p195 = scmp.ne.s32.totalorder %s183, %s184
    %p196 = scmp.eq.s32.totalorder %s22, 2
    %p197 = por %p195, %p196
    %p199 = scmp.ne.s32.totalorder %s184, %s198
    %p200 = scmp.eq.s32.totalorder %s22, 0
    %p201 = por %p199, %p200
    %s203 = sadd.s32 %s202, 1
    %p206 = scmp.eq.s32.totalorder %s16, 2
    %p207 = scmp.ne.s32.totalorder %s202, %s204
    %p208 = scmp.eq.s32.totalorder %s16, 0
    %p209 = por %p207, %p208
    %p210 = scmp.ne.s32.totalorder %s202, %s204
    %p211 = scmp.eq.s32.totalorder %s21, 2
    %p212 = por %p210, %p211
    %p213 = scmp.ne.s32.totalorder %s204, %s205
    %p214 = scmp.eq.s32.totalorder %s21, 0
    %p215 = por %p213, %p214
    %p216 = scmp.ne.s32.totalorder %s204, %s205
    %p217 = scmp.eq.s32.totalorder %s22, 2
    %p218 = por %p216, %p217
    %p220 = scmp.ne.s32.totalorder %s205, %s219
    %p221 = scmp.eq.s32.totalorder %s22, 0
    %p222 = por %p220, %p221
    %s223 = ssub.s32 %s16, %s23
    %p224 = scmp.eq.s32.totalorder %s223, 0
    %s226 = sadd.s32 %s225, 1
    %s227 = scalar_select %p224, %s225, %s226
    %p230 = pneg %p224
    %p231 = scmp.eq.s32.totalorder %s16, 2
    %p232 = por %p230, %p231
    %p233 = scmp.ne.s32.totalorder %s225, %s228
    %p234 = scmp.eq.s32.totalorder %s16, 0
    %p235 = por %p233, %p234
    %p236 = scmp.ne.s32.totalorder %s225, %s228
    %p237 = scmp.eq.s32.totalorder %s21, 2
    %p238 = por %p236, %p237
    %p239 = scmp.ne.s32.totalorder %s228, %s229
    %p240 = scmp.eq.s32.totalorder %s21, 0
    %p241 = por %p239, %p240
    %p242 = scmp.ne.s32.totalorder %s228, %s229
    %p243 = scmp.eq.s32.totalorder %s22, 2
    %p244 = por %p242, %p243
    %p246 = scmp.ne.s32.totalorder %s229, %s245
    %p247 = scmp.eq.s32.totalorder %s22, 0
    %p248 = por %p246, %p247
    %p249 = scmp.le.s32.totalorder 1, %s16
    %p250 = scmp.lt.s32.totalorder %s16, 4
    %p251 = pnand %p249, %p250
    %p252 = pneg %p251
    // Predicated region
    $region9: #{critic_forward.1} parent=5 // pred_check
      _
    $region10: #{critic_forward.1} parent=5 // pred_check_branch
      %254 = sbr.rel (%p251) target = $region12
    $region11: #{critic_forward.1} parent=5 // pred_region
      %s255 = ssub.s32 %s16, 1
      // Predicated region
      $region13: #{critic_forward.1} parent=11 // pred_check
        %p256 = pneg %p89
      $region14: #{critic_forward.1} parent=11 // pred_check_branch
        %258 = sbr.rel (%p256) target = $region16
      $region15: #{critic_forward.1} parent=11 // pred_region
        _
      $region16: #{critic_forward.1} parent=11 // pred_fallthru
        _
      // Predicated region
      $region17: #{critic_forward.1} parent=11 // pred_check
        %p259 = pneg %p110
      $region18: #{critic_forward.1} parent=11 // pred_check_branch
        %261 = sbr.rel (%p259) target = $region20
      $region19: #{critic_forward.1} parent=11 // pred_region
        _
      $region20: #{critic_forward.1} parent=11 // pred_fallthru
        _
      // Predicated region
      $region21: #{critic_forward.1} parent=11 // pred_check
        %p262 = pneg %p131
      $region22: #{critic_forward.1} parent=11 // pred_check_branch
        %264 = sbr.rel (%p262) target = $region24
      $region23: #{critic_forward.1} parent=11 // pred_region
        _
      $region24: #{critic_forward.1} parent=11 // pred_fallthru
        _
      // Predicated region
      $region25: #{critic_forward.1} parent=11 // pred_check
        %p265 = pneg %p152
      $region26: #{critic_forward.1} parent=11 // pred_check_branch
        %267 = sbr.rel (%p265) target = $region28
      $region27: #{critic_forward.1} parent=11 // pred_region
        _
      $region28: #{critic_forward.1} parent=11 // pred_fallthru
        _
      // Predicated region
      $region29: #{critic_forward.1} parent=11 // pred_check
        %p268 = pneg %p173
      $region30: #{critic_forward.1} parent=11 // pred_check_branch
        %270 = sbr.rel (%p268) target = $region32
      $region31: #{critic_forward.1} parent=11 // pred_region
        _
      $region32: #{critic_forward.1} parent=11 // pred_fallthru
        _
      // Predicated region
      $region33: #{critic_forward.1} parent=11 // pred_check
        %p271 = pneg %p194
      $region34: #{critic_forward.1} parent=11 // pred_check_branch
        %273 = sbr.rel (%p271) target = $region36
      $region35: #{critic_forward.1} parent=11 // pred_region
        _
      $region36: #{critic_forward.1} parent=11 // pred_fallthru
        _
      // Predicated region
      $region37: #{critic_forward.1} parent=11 // pred_check
        %p274 = pneg %p215
      $region38: #{critic_forward.1} parent=11 // pred_check_branch
        %276 = sbr.rel (%p274) target = $region40
      $region39: #{critic_forward.1} parent=11 // pred_region
        _
      $region40: #{critic_forward.1} parent=11 // pred_fallthru
        _
    $region12: #{critic_forward.1} parent=5 // pred_fallthru
      _
    %p277 = scmp.lt.s32.totalorder %s16, 3
    // Predicated region
    $region41: #{critic_forward.1} parent=5 // pred_check
      %p278 = pneg %p277
    $region42: #{critic_forward.1} parent=5 // pred_check_branch
      %280 = sbr.rel (%p278) target = $region44
    $region43: #{critic_forward.1} parent=5 // pred_region
      // Predicated region
      $region45: #{critic_forward.1} parent=43 // pred_check
        %p281 = pneg %p36
      $region46: #{critic_forward.1} parent=43 // pred_check_branch
        %283 = sbr.rel (%p281) target = $region48
      $region47: #{critic_forward.1} parent=43 // pred_region
        %p284 = scmp.lt.s32.totalorder %s16, 2
        %s285 = scalar_select %p284, %s16, 2
        %s286 = smul.addr %s285, 8
        %s287 = scalar_lea.vmem %s0, %s286
      $region48: #{critic_forward.1} parent=43 // pred_fallthru
        _
      // Predicated region
      $region49: #{critic_forward.1} parent=43 // pred_check
        %p288 = pneg %p62
      $region50: #{critic_forward.1} parent=43 // pred_check_branch
        %290 = sbr.rel (%p288) target = $region52
      $region51: #{critic_forward.1} parent=43 // pred_region
        %p291 = scmp.lt.s32.totalorder %s16, 2
        %s292 = scalar_select %p291, %s16, 2
        %s293 = smul.addr %s292, 8
        %s294 = scalar_lea.vmem %s1, %s293
      $region52: #{critic_forward.1} parent=43 // pred_fallthru
        _
    $region44: #{critic_forward.1} parent=5 // pred_fallthru
      _
    %p295 = scmp.le.s32.totalorder 1, %s16
    %p296 = scmp.lt.s32.totalorder %s16, 4
    %p297 = pnand %p295, %p296
    %p298 = pneg %p297
    // Predicated region
    $region53: #{critic_forward.1} parent=5 // pred_check
      _
    $region54: #{critic_forward.1} parent=5 // pred_check_branch
      %300 = sbr.rel (%p297) target = $region56
    $region55: #{critic_forward.1} parent=5 // pred_region
      %s301 = ssub.s32 %s16, 1
      %p302 = scmp.lt.s32.totalorder %s21, 2
      %s303 = scalar_select %p302, %s21, 2
      %s304 = smul.addr %s303, 8
      %s305 = scalar_lea.vmem %s0, %s304
      %p306 = pneg %p42
      %p307 = pneg %p39
      %p308 = scmp.lt.s32.totalorder %s21, 2
      %s309 = scalar_select %p308, %s21, 2
      %s310 = smul.addr %s309, 8
      %s311 = scalar_lea.vmem %s1, %s310
      %p312 = pneg %p68
      %p313 = pneg %p65
      %p314 = pneg %p89
      %p315 = pneg %p86
      %p316 = pneg %p110
      %p317 = pneg %p107
      %p318 = pneg %p131
      %p319 = pneg %p128
      %p320 = pneg %p152
      %p321 = pneg %p149
      %p322 = pneg %p173
      %p323 = pneg %p170
      %p324 = pneg %p194
      %p325 = pneg %p191
      %p326 = pneg %p215
      %p327 = pneg %p212
      %p328 = pneg %p241
      %p329 = pneg %p238
      %p330 = scmp.lt.s32.totalorder %s21, 2
      %s331 = scalar_select %p330, %s21, 2
      %s332 = smul.addr %s331, 8
      %s333 = scalar_lea.vmem %s9, %s332
      %p334 = scmp.lt.s32.totalorder %s21, 2
      %s335 = scalar_select %p334, %s21, 2
      %s336 = smul.addr %s335, 8
      %s337 = scalar_lea.vmem %s0, %s336
      %p338 = scmp.lt.s32.totalorder %s21, 2
      %s339 = scalar_select %p338, %s21, 2
      %s340 = smul.addr %s339, 8
      %s341 = scalar_lea.vmem %s1, %s340
      %p342 = scmp.lt.s32.totalorder %s21, 2
      %s343 = scalar_select %p342, %s21, 2
      %s344 = smul.addr %s343, 8
      %s345 = scalar_lea.vmem %s9, %s344
      %v347 = vld [vmem:[%s337] sm:$0xff]
      %v348 = vpack.c.bf16 %v347, %v347
      %v349 = vld [vmem:[%s341] sm:$0xff]
      %v350 = vpack.c.bf16 %v349, %v349
      %v351 = vld [vmem:[%s2] sm:$0xff]
      %v352 = vld [vmem:[%s2 + $0x8] sm:$0x33]
      %v353 = vld [vmem:[%s3] sm:$0xf]
      %355 = vst [vmem:[#allocation1] ss:$4 sm:$0xff] %v353
      %v356 = vld.sshfl [vmem:[#allocation1] sm:$0xff pattern:$0x73625140]
      %v357 = vld.sshfl [vmem:[#allocation1 + $0x8] sm:$0xff pattern:$0x73625140]
      %vm358 = vcmask 31744
      %v360 = vsel %vm358, %v350, 0
      %vm362 = vcmask 1041408
      %v363 = vsel %vm362, %v356, 0
      %v365 = vsel %vm362, %v357, 0
      %367 = vmatpush.bf16.msra.mxu0 0
      %368 = vmatpush.bf16.msra.mxu0 0
      %369 = vmatpush.bf16.msra.mxu0 0
      %370 = vmatpush.bf16.msra.mxu0 0
      %371 = vmatpush.bf16.msra.mxu0 0
      %372 = vmatpush.bf16.msra.mxu0 0
      %373 = vmatpush.bf16.msra.mxu0 0
      %374 = vmatpush.bf16.msra.mxu0 %v363
      %375 = vmatmul.bf16.gmra.mxu0 %v360
      %v376 = vpop.f32.mrf.mxu0
      %v377 = vadd.f32 0.0, %v376
      %v378 = vpop.f32.mrf.mxu0
      %379 = vdwg.mxu0
      %380 = vmatpush.bf16.msra.mxu0 0
      %381 = vmatpush.bf16.msra.mxu0 0
      %382 = vmatpush.bf16.msra.mxu0 0
      %383 = vmatpush.bf16.msra.mxu0 0
      %384 = vmatpush.bf16.msra.mxu0 0
      %385 = vmatpush.bf16.msra.mxu0 0
      %386 = vmatpush.bf16.msra.mxu0 0
      %387 = vmatpush.bf16.msra.mxu0 %v365
      %388 = vmatmul.bf16.gmra.mxu0 %v360
      %v389 = vpop.f32.mrf.mxu0
      %v390 = vadd.f32 0.0, %v389
      %v391 = vpop.f32.mrf.mxu0
      %392 = vdwg.mxu0
      %v395 = vunpack.c.l.b16 %v351
      %v396 = vunpack.c.h.b16 %v351
      %v397 = vunpack.c.l.b16 %v352
      %v398 = vunpack.c.h.b16 %v352
      %v399 = vpack.c.b16 %v397, %v395
      %v400 = vpack.c.b16 %v398, %v396
      %vm401 = vcmask 97280
      %v403 = vsel %vm401, %v348, 0
      %vm405 = vcmask 1045504
      %v407 = vsel %vm405, %v399, 0
      %v410 = vsel %vm405, %v400, 0
      %412 = vmatpush.bf16.msra.mxu0 0
      %413 = vmatpush.bf16.msra.mxu0 0
      %414 = vmatpush.bf16.msra.mxu0 0
      %415 = vmatpush.bf16.msra.mxu0 0
      %416 = vmatpush.bf16.msra.mxu0 0
      %417 = vmatpush.bf16.msra.mxu0 0
      %418 = vmatpush.bf16.msra.mxu0 0
      %419 = vmatpush.bf16.msra.mxu0 %v407
      %420 = vmatmul.bf16.gmra.mxu0 %v403
      %v421 = vpop.f32.mrf.mxu0
      %v422 = vadd.f32 %v377, %v421
      %v423 = vpop.f32.mrf.mxu0
      %424 = vdwg.mxu0
      %425 = vmatpush.bf16.msra.mxu0 0
      %426 = vmatpush.bf16.msra.mxu0 0
      %427 = vmatpush.bf16.msra.mxu0 0
      %428 = vmatpush.bf16.msra.mxu0 0
      %429 = vmatpush.bf16.msra.mxu0 0
      %430 = vmatpush.bf16.msra.mxu0 0
      %431 = vmatpush.bf16.msra.mxu0 0
      %432 = vmatpush.bf16.msra.mxu0 %v410
      %433 = vmatmul.bf16.gmra.mxu0 %v403
      %v434 = vpop.f32.mrf.mxu0
      %v435 = vadd.f32 %v390, %v434
      %v436 = vpop.f32.mrf.mxu0
      %437 = vdwg.mxu0
      %v438 = vld [vmem:[%s4] sm:$0x3]
      %v440 = vperm.slane %v438, 0
      %v441 = vperm.slane %v438, 1
      %v444 = vadd.f32 %v422, %v440
      %v445 = vadd.f32 %v435, %v441
      %v446 = vmax.f32 %v444, 0.0
      %v447 = vmax.f32 %v445, 0.0
      %v448 = vpack.c.bf16 %v446, %v446
      %v449 = vpack.c.bf16 %v447, %v447
      %v450 = vld [vmem:[%s5] sm:$0xff]
      %v451 = vld [vmem:[%s5 + $0x8] sm:$0xff]
      %v452 = vld [vmem:[%s5 + $0x10] sm:$0xff]
      %v453 = vld [vmem:[%s5 + $0x18] sm:$0xff]
      %v454 = vld [vmem:[%s5 + $0x20] sm:$0xff]
      %v455 = vld [vmem:[%s5 + $0x28] sm:$0xff]
      %v456 = vld [vmem:[%s5 + $0x30] sm:$0xff]
      %v457 = vld [vmem:[%s5 + $0x38] sm:$0xff]
      %v458 = vld [vmem:[%s5 + $0x40] sm:$0xff]
      %v459 = vld [vmem:[%s5 + $0x48] sm:$0xff]
      %v460 = vld [vmem:[%s5 + $0x50] sm:$0xff]
      %v461 = vld [vmem:[%s5 + $0x58] sm:$0xff]
      %v462 = vld [vmem:[%s5 + $0x60] sm:$0xff]
      %v463 = vld [vmem:[%s5 + $0x68] sm:$0xff]
      %v464 = vld [vmem:[%s5 + $0x70] sm:$0xff]
      %v465 = vld [vmem:[%s5 + $0x78] sm:$0xff]
      %v466 = vld [vmem:[%s5 + $0x80] sm:$0xff]
      %v467 = vld [vmem:[%s5 + $0x88] sm:$0xff]
      %v468 = vld [vmem:[%s5 + $0x90] sm:$0xff]
      %v469 = vld [vmem:[%s5 + $0x98] sm:$0xff]
      %v470 = vld [vmem:[%s5 + $0xa0] sm:$0xff]
      %v471 = vld [vmem:[%s5 + $0xa8] sm:$0xff]
      %v472 = vld [vmem:[%s5 + $0xb0] sm:$0xff]
      %v473 = vld [vmem:[%s5 + $0xb8] sm:$0xff]
      %v474 = vld [vmem:[%s5 + $0xc0] sm:$0xff]
      %v475 = vld [vmem:[%s5 + $0xc8] sm:$0xff]
      %v476 = vld [vmem:[%s5 + $0xd0] sm:$0xff]
      %v477 = vld [vmem:[%s5 + $0xd8] sm:$0xff]
      %v478 = vld [vmem:[%s5 + $0xe0] sm:$0xff]
      %v479 = vld [vmem:[%s5 + $0xe8] sm:$0xff]
      %v480 = vld [vmem:[%s5 + $0xf0] sm:$0xff]
      %v481 = vld [vmem:[%s5 + $0xf8] sm:$0xff]
      %v482 = vld [vmem:[%s6] sm:$0x3]
      %v484 = vperm.slane %v482, 0
      %v485 = vperm.slane %v482, 1
      %v520 = vunpack.c.l.b16 %v450
      %v521 = vunpack.c.h.b16 %v450
      %v522 = vunpack.c.l.b16 %v451
      %v523 = vunpack.c.h.b16 %v451
      %v524 = vunpack.c.l.b16 %v452
      %v525 = vunpack.c.h.b16 %v452
      %v526 = vunpack.c.l.b16 %v453
      %v527 = vunpack.c.h.b16 %v453
      %v528 = vunpack.c.l.b16 %v454
      %v529 = vunpack.c.h.b16 %v454
      %v530 = vunpack.c.l.b16 %v455
      %v531 = vunpack.c.h.b16 %v455
      %v532 = vunpack.c.l.b16 %v456
      %v533 = vunpack.c.h.b16 %v456
      %v534 = vunpack.c.l.b16 %v457
      %v535 = vunpack.c.h.b16 %v457
      %v536 = vunpack.c.l.b16 %v458
      %v537 = vunpack.c.h.b16 %v458
      %v538 = vunpack.c.l.b16 %v459
      %v539 = vunpack.c.h.b16 %v459
      %v540 = vunpack.c.l.b16 %v460
      %v541 = vunpack.c.h.b16 %v460
      %v542 = vunpack.c.l.b16 %v461
      %v543 = vunpack.c.h.b16 %v461
      %v544 = vunpack.c.l.b16 %v462
      %v545 = vunpack.c.h.b16 %v462
      %v546 = vunpack.c.l.b16 %v463
      %v547 = vunpack.c.h.b16 %v463
      %v548 = vunpack.c.l.b16 %v464
      %v549 = vunpack.c.h.b16 %v464
      %v550 = vunpack.c.l.b16 %v465
      %v551 = vunpack.c.h.b16 %v465
      %v552 = vunpack.c.l.b16 %v466
      %v553 = vunpack.c.h.b16 %v466
      %v554 = vunpack.c.l.b16 %v467
      %v555 = vunpack.c.h.b16 %v467
      %v556 = vunpack.c.l.b16 %v468
      %v557 = vunpack.c.h.b16 %v468
      %v558 = vunpack.c.l.b16 %v469
      %v559 = vunpack.c.h.b16 %v469
      %v560 = vunpack.c.l.b16 %v470
      %v561 = vunpack.c.h.b16 %v470
      %v562 = vunpack.c.l.b16 %v471
      %v563 = vunpack.c.h.b16 %v471
      %v564 = vunpack.c.l.b16 %v472
      %v565 = vunpack.c.h.b16 %v472
      %v566 = vunpack.c.l.b16 %v473
      %v567 = vunpack.c.h.b16 %v473
      %v568 = vunpack.c.l.b16 %v474
      %v569 = vunpack.c.h.b16 %v474
      %v570 = vunpack.c.l.b16 %v475
      %v571 = vunpack.c.h.b16 %v475
      %v572 = vunpack.c.l.b16 %v476
      %v573 = vunpack.c.h.b16 %v476
      %v574 = vunpack.c.l.b16 %v477
      %v575 = vunpack.c.h.b16 %v477
      %v576 = vunpack.c.l.b16 %v478
      %v577 = vunpack.c.h.b16 %v478
      %v578 = vunpack.c.l.b16 %v479
      %v579 = vunpack.c.h.b16 %v479
      %v580 = vunpack.c.l.b16 %v480
      %v581 = vunpack.c.h.b16 %v480
      %v582 = vunpack.c.l.b16 %v481
      %v583 = vunpack.c.h.b16 %v481
      %v584 = vpack.c.b16 %v522, %v520
      %v585 = vpack.c.b16 %v523, %v521
      %v586 = vpack.c.b16 %v526, %v524
      %v587 = vpack.c.b16 %v527, %v525
      %v588 = vpack.c.b16 %v530, %v528
      %v589 = vpack.c.b16 %v531, %v529
      %v590 = vpack.c.b16 %v534, %v532
      %v591 = vpack.c.b16 %v535, %v533
      %v592 = vpack.c.b16 %v538, %v536
      %v593 = vpack.c.b16 %v539, %v537
      %v594 = vpack.c.b16 %v542, %v540
      %v595 = vpack.c.b16 %v543, %v541
      %v596 = vpack.c.b16 %v546, %v544
      %v597 = vpack.c.b16 %v547, %v545
      %v598 = vpack.c.b16 %v550, %v548
      %v599 = vpack.c.b16 %v551, %v549
      %v600 = vpack.c.b16 %v554, %v552
      %v601 = vpack.c.b16 %v555, %v553
      %v602 = vpack.c.b16 %v558, %v556
      %v603 = vpack.c.b16 %v559, %v557
      %v604 = vpack.c.b16 %v562, %v560
      %v605 = vpack.c.b16 %v563, %v561
      %v606 = vpack.c.b16 %v566, %v564
      %v607 = vpack.c.b16 %v567, %v565
      %v608 = vpack.c.b16 %v570, %v568
      %v609 = vpack.c.b16 %v571, %v569
      %v610 = vpack.c.b16 %v574, %v572
      %v611 = vpack.c.b16 %v575, %v573
      %v612 = vpack.c.b16 %v578, %v576
      %v613 = vpack.c.b16 %v579, %v577
      %v614 = vpack.c.b16 %v582, %v580
      %v615 = vpack.c.b16 %v583, %v581
      %648 = vmatpush.bf16.msra.mxu0 %v598
      %649 = vmatpush.bf16.msra.mxu0 %v596
      %650 = vmatpush.bf16.msra.mxu0 %v594
      %651 = vmatpush.bf16.msra.mxu0 %v592
      %652 = vmatpush.bf16.msra.mxu0 %v590
      %653 = vmatpush.bf16.msra.mxu0 %v588
      %654 = vmatpush.bf16.msra.mxu0 %v586
      %655 = vmatpush.bf16.msra.mxu0 %v584
      %656 = vmatmul.bf16.gmra.mxu0 %v448
      %v657 = vpop.f32.mrf.mxu0
      %v658 = vadd.f32 %v484, %v657
      %v659 = vpop.f32.mrf.mxu0
      %660 = vdwg.mxu0
      %661 = vmatpush.bf16.msra.mxu0 %v614
      %662 = vmatpush.bf16.msra.mxu0 %v612
      %663 = vmatpush.bf16.msra.mxu0 %v610
      %664 = vmatpush.bf16.msra.mxu0 %v608
      %665 = vmatpush.bf16.msra.mxu0 %v606
      %666 = vmatpush.bf16.msra.mxu0 %v604
      %667 = vmatpush.bf16.msra.mxu0 %v602
      %668 = vmatpush.bf16.msra.mxu0 %v600
      %669 = vmatmul.bf16.gmra.mxu0 %v449
      %v670 = vpop.f32.mrf.mxu0
      %v671 = vadd.f32 %v658, %v670
      %v672 = vpop.f32.mrf.mxu0
      %673 = vdwg.mxu0
      %674 = vmatpush.bf16.msra.mxu0 %v599
      %675 = vmatpush.bf16.msra.mxu0 %v597
      %676 = vmatpush.bf16.msra.mxu0 %v595
      %677 = vmatpush.bf16.msra.mxu0 %v593
      %678 = vmatpush.bf16.msra.mxu0 %v591
      %679 = vmatpush.bf16.msra.mxu0 %v589
      %680 = vmatpush.bf16.msra.mxu0 %v587
      %681 = vmatpush.bf16.msra.mxu0 %v585
      %682 = vmatmul.bf16.gmra.mxu0 %v448
      %v683 = vpop.f32.mrf.mxu0
      %v684 = vadd.f32 %v485, %v683
      %v685 = vpop.f32.mrf.mxu0
      %686 = vdwg.mxu0
      %687 = vmatpush.bf16.msra.mxu0 %v615
      %688 = vmatpush.bf16.msra.mxu0 %v613
      %689 = vmatpush.bf16.msra.mxu0 %v611
      %690 = vmatpush.bf16.msra.mxu0 %v609
      %691 = vmatpush.bf16.msra.mxu0 %v607
      %692 = vmatpush.bf16.msra.mxu0 %v605
      %693 = vmatpush.bf16.msra.mxu0 %v603
      %694 = vmatpush.bf16.msra.mxu0 %v601
      %695 = vmatmul.bf16.gmra.mxu0 %v449
      %v696 = vpop.f32.mrf.mxu0
      %v697 = vadd.f32 %v684, %v696
      %v698 = vpop.f32.mrf.mxu0
      %699 = vdwg.mxu0
      %v700 = vmax.f32 %v671, 0.0
      %v701 = vmax.f32 %v697, 0.0
      %v702 = vld [vmem:[%s7] sm:$0x3]
      %v704 = vperm.slane %v702, 0
      %v705 = vperm.slane %v702, 1
      %v708 = vmul.f32 %v700, %v704
      %v709 = vmul.f32 %v701, %v705
      %v710 = vadd.f32 %v708, %v709
      %711 = vadd.xlane.f32.xlu0 %v710
      %v712 = vpop.xlane.xlu0 %711
      %s713 = sld [smem:[#allocation2]]
      %v714 = vstv %s713
      %v715 = vadd.f32 %v712, %v714
      %vm716 = vcmask 7168
      %717 = vst.msk [vmem:[%s345] sm:$0xff] %vm716, %v715
      %p718 = scmp.lt.s32.totalorder %s21, 2
      %s719 = scalar_select %p718, %s21, 2
      %s720 = smul.addr %s719, 8
      %s721 = scalar_lea.vmem %s9, %s720
      // Predicated region
      $region57: #{critic_forward.1} parent=55 // pred_check
        %p722 = pneg %p238
      $region58: #{critic_forward.1} parent=55 // pred_check_branch
        %724 = sbr.rel (%p722) target = $region60
      $region59: #{critic_forward.1} parent=55 // pred_region
        _
      $region60: #{critic_forward.1} parent=55 // pred_fallthru
        _
    $region56: #{critic_forward.1} parent=5 // pred_fallthru
      _
    %p725 = scmp.le.s32.totalorder 2, %s16
    // Predicated region
    $region61: #{critic_forward.1} parent=5 // pred_check
      %p726 = pneg %p725
    $region62: #{critic_forward.1} parent=5 // pred_check_branch
      %728 = sbr.rel (%p726) target = $region64
    $region63: #{critic_forward.1} parent=5 // pred_region
      %s729 = ssub.s32 %s16, 2
      // Predicated region
      $region65: #{critic_forward.1} parent=63 // pred_check
        %p730 = pneg %p244
      $region66: #{critic_forward.1} parent=63 // pred_check_branch
        %732 = sbr.rel (%p730) target = $region68
      $region67: #{critic_forward.1} parent=63 // pred_region
        %p733 = scmp.lt.s32.totalorder %s22, 2
        %s734 = scalar_select %p733, %s22, 2
        %s735 = smul.addr %s734, 8
        %s736 = scalar_lea.vmem %s9, %s735
      $region68: #{critic_forward.1} parent=63 // pred_fallthru
        _
    $region64: #{critic_forward.1} parent=5 // pred_fallthru
      _
  $region6: #{critic_forward.1} parent=0 // loop_footer
    %s20 = sadd.s32 1, %s16
  $region7: #{critic_forward.1} parent=0 // loop_footer_branch
    %15 = sbr.rel target = $region3
  $region8: #{critic_forward.1} parent=0 // loop_exit
    _

</llo_original>
